<compile_context>
chip_gen: v7x
topology: tpu7x:2x2x1
jax: 0.10.0
libtpu: 0.0.40
codegen_flags: <defaults>
</compile_context>

<pallas_src>
import functools

import jax
import jax.numpy as jnp
from jax import lax
from jax.experimental import pallas as pl
from jax.experimental.pallas import tpu as pltpu

# Finite "-inf": exp underflows to 0; with tq == tk every processed row keeps
# at least one live column, so the running max is always finite.
_MASK_VALUE = -1e30
_VMEM_BUDGET = 24 * 1024 * 1024   # conservative per-kernel block budget (v7x-safe)
_VMEM_LIMIT = 32 * 1024 * 1024    # scoped VMEM limit passed to the compiler


def _divisor_tile(n, candidates):
    """Largest candidate that divides n; fall back to the full extent."""
    for c in candidates:
        if c <= n and n % c == 0:
            return c
    return n


# ---------------------------------------------------------------------------
# Kernel 1: fused QKV projection with K-reduction over d_in
#   grid = (bT // tm, d_in // tk_in)
# ---------------------------------------------------------------------------
def _qkv_proj_kernel(x_ref, w_ref, q_ref, k_ref, v_ref, acc_ref, *, d_pad):
    ki = pl.program_id(1)

    @pl.when(ki == 0)
    def _init():
        acc_ref[...] = jnp.zeros_like(acc_ref)

    # bf16 x bf16 -> f32 accumulation on the MXU.
    acc_ref[...] += jnp.dot(x_ref[...], w_ref[...],
                            preferred_element_type=jnp.float32)

    @pl.when(ki == pl.num_programs(1) - 1)
    def _finalize():
        acc = acc_ref[...]
        # 128-aligned static slices of the VMEM accumulator -> cheap, lane-dense stores.
        q_ref[...] = acc[:, :d_pad].astype(q_ref.dtype)
        k_ref[...] = acc[:, d_pad:2 * d_pad].astype(k_ref.dtype)
        v_ref[...] = acc[:, 2 * d_pad:].astype(v_ref.dtype)


# ---------------------------------------------------------------------------
# Kernel 2: flash attention with online softmax + causal tile skipping
#   grid = (b, T // tq, T // tk)    (tq == tk)
# ---------------------------------------------------------------------------
def _flash_attn_kernel(q_ref, k_ref, v_ref, o_ref, m_ref, l_ref, acc_ref, *, tq, tk):
    qi = pl.program_id(1)
    ki = pl.program_id(2)

    @pl.when(ki == 0)
    def _init():
        m_ref[...] = jnp.full_like(m_ref, -jnp.inf)
        l_ref[...] = jnp.zeros_like(l_ref)
        acc_ref[...] = jnp.zeros_like(acc_ref)

    q_start = qi * tq
    k_start = ki * tk

    def update(apply_mask):
        q = q_ref[0]   # (tq, d_pad) bf16; already scaled by 1/sqrt(d_k) via the weights
        k = k_ref[0]   # (tk, d_pad) bf16
        v = v_ref[0]   # (tk, d_pad) bf16
        # NT contraction on the last dims: lowers to the MXU directly (no XLU
        # transpose of k); f32 accumulation.
        s = lax.dot_general(q, k, (((1,), (1,)), ((), ())),
                            preferred_element_type=jnp.float32)     # (tq, tk) f32
        if apply_mask:   # only on diagonal-straddling KV tiles
            rows = q_start + lax.broadcasted_iota(jnp.int32, (tq, tk), 0)
            cols = k_start + lax.broadcasted_iota(jnp.int32, (tq, tk), 1)
            s = jnp.where(cols > rows, _MASK_VALUE, s)

        m_prev = m_ref[...]
        m_new = jnp.maximum(m_prev, jnp.max(s, axis=-1, keepdims=True))
        alpha = jnp.exp(m_prev - m_new)
        p = jnp.exp(s - m_new)
        l_ref[...] = alpha * l_ref[...] + jnp.sum(p, axis=-1, keepdims=True)
        acc_ref[...] = alpha * acc_ref[...] + jnp.dot(
            p.astype(v.dtype), v, preferred_element_type=jnp.float32)
        m_ref[...] = m_new

    # KV tile entirely at-or-below the diagonal -> no mask work at all.
    fully_unmasked = (k_start + (tk - 1)) <= q_start
    # KV tile entirely above the diagonal -> skip it completely (its DMA is also
    # suppressed via the clamped index_map in the wrapper).
    not_fully_masked = k_start <= (q_start + (tq - 1))

    @pl.when(fully_unmasked)
    def _no_mask():
        update(apply_mask=False)

    @pl.when(jnp.logical_and(not_fully_masked, jnp.logical_not(fully_unmasked)))
    def _diag():
        update(apply_mask=True)

    @pl.when(ki == pl.num_programs(2) - 1)
    def _finalize():
        inv_l = pl.reciprocal(l_ref[...], approx=True)   # EUP slot, ~free
        o_ref[0] = (acc_ref[...] * inv_l).astype(o_ref.dtype)


# ---------------------------------------------------------------------------
# Wrapper
# ---------------------------------------------------------------------------
def causal_attention(x, w_query, w_key, w_value, dropout_p=0.0):
    """x: (b, T, d_in); w_*: PyTorch nn.Linear weights of shape (d_out, d_in)."""
    del dropout_p  # eval-mode: identity
    b, T, d_in = x.shape
    d_out = w_query.shape[0]
    out_dtype = x.dtype
    out_item = jnp.dtype(out_dtype).itemsize
    bf16_item = 2

    # Pad the head dim to a multiple of 128 so all stores are lane-dense.
    d_pad = max(128, ((d_out + 127) // 128) * 128)
    scale = 1.0 / (float(d_out) ** 0.5)

    def prep_w(w, s=1.0):
        # Fold the softmax scale in f32, then cast to bf16 (MXU-native dtype).
        wt = (w.astype(jnp.float32).T * s).astype(jnp.bfloat16)   # (d_in, d_out)
        return jnp.pad(wt, ((0, 0), (0, d_pad - d_out)))          # (d_in, d_pad)

    w_qkv = jnp.concatenate(
        [prep_w(w_query, scale), prep_w(w_key), prep_w(w_value)], axis=1)  # (d_in, 3*d_pad)

    # ----- QKV projection over (b*T, d_in): large MXU M, K-tiled over d_in ---
    bT = b * T
    x2d = x.reshape(bT, d_in).astype(jnp.bfloat16)

    tk_in = _divisor_tile(d_in, (512, 256, 128))
    nk_in = d_in // tk_in

    def qkv_vmem(tm_):
        return (2 * tm_ * tk_in * bf16_item          # x tiles (double-buffered)
                + 2 * tk_in * 3 * d_pad * bf16_item  # weight tiles (double-buffered)
                + 3 * 2 * tm_ * d_pad * bf16_item    # q/k/v output tiles (double-buffered)
                + tm_ * 3 * d_pad * 4)               # f32 accumulator scratch

    tm = bT
    for c in (1024, 512, 256, 128, 64, 32, 16, 8):
        if c <= bT and bT % c == 0 and qkv_vmem(c) <= _VMEM_BUDGET:
            tm = c
            break

    qkv_cost = pl.CostEstimate(
        flops=int(2 * bT * d_in * 3 * d_pad),
        transcendentals=0,
        bytes_accessed=int(bf16_item * (bT * d_in
                                        + (bT // tm) * d_in * 3 * d_pad
                                        + 3 * bT * d_pad)),
    )
    q2d, k2d, v2d = pl.pallas_call(
        functools.partial(_qkv_proj_kernel, d_pad=d_pad),
        out_shape=tuple(jax.ShapeDtypeStruct((bT, d_pad), jnp.bfloat16) for _ in range(3)),
        grid_spec=pltpu.PrefetchScalarGridSpec(
            num_scalar_prefetch=0,
            grid=(bT // tm, nk_in),
            in_specs=[
                pl.BlockSpec((tm, tk_in), lambda i, k: (i, k)),
                pl.BlockSpec((tk_in, 3 * d_pad), lambda i, k: (k, 0)),
            ],
            out_specs=[pl.BlockSpec((tm, d_pad), lambda i, k: (i, 0))] * 3,
            scratch_shapes=[pltpu.VMEM((tm, 3 * d_pad), jnp.float32)],
        ),
        compiler_params=pltpu.CompilerParams(
            dimension_semantics=("parallel", "arbitrary"),
            vmem_limit_bytes=_VMEM_LIMIT,
        ),
        cost_estimate=qkv_cost,
    )(x2d, w_qkv)

    q = q2d.reshape(b, T, d_pad)
    k = k2d.reshape(b, T, d_pad)
    v = v2d.reshape(b, T, d_pad)

    # ----- Flash attention: grid (b, q-tiles, kv-tiles) ----------------------
    def attn_vmem(t):
        return (3 * 2 * t * d_pad * bf16_item    # q/k/v tiles (double-buffered)
                + 2 * t * d_pad * out_item       # output tile (double-buffered)
                + t * d_pad * 4 + 2 * t * 4)     # f32 acc + m + l scratch

    tq = T
    for c in (1024, 512, 256, 128, 64, 32, 16, 8):
        if c <= T and T % c == 0 and attn_vmem(c) <= _VMEM_BUDGET:
            tq = c
            break
    tk = tq
    # Required so the finite _MASK_VALUE + tile-skip logic guarantees every
    # processed row already has a finite running max (see correctness note).
    assert tq == tk
    nq, nk = T // tq, T // tk

    kv_restream = (nq + 1) / 2.0   # causal DMA clamp => ~triangular K/V re-reads
    attn_cost = pl.CostEstimate(
        flops=int(2 * b * T * T * d_pad),                 # causal halving of 4*b*T*T*d_pad
        transcendentals=int(b * T * T // 2),
        bytes_accessed=int(bf16_item * b * T * d_pad * (1 + 2 * kv_restream)
                           + out_item * b * T * d_pad),
    )

    # K/V index_maps clamp ki to qi: for causally-skipped steps the block index
    # does not change, so Pallas suppresses the (wasted) DMA entirely.
    kv_index_map = lambda bi, qi, ki: (bi, jnp.minimum(ki, qi), 0)

    out = pl.pallas_call(
        functools.partial(_flash_attn_kernel, tq=tq, tk=tk),
        out_shape=jax.ShapeDtypeStruct((b, T, d_pad), out_dtype),
        grid_spec=pltpu.PrefetchScalarGridSpec(
            num_scalar_prefetch=0,
            grid=(b, nq, nk),
            in_specs=[
                pl.BlockSpec((1, tq, d_pad), lambda bi, qi, ki: (bi, qi, 0)),
                pl.BlockSpec((1, tk, d_pad), kv_index_map),
                pl.BlockSpec((1, tk, d_pad), kv_index_map),
            ],
            out_specs=pl.BlockSpec((1, tq, d_pad), lambda bi, qi, ki: (bi, qi, 0)),
            scratch_shapes=[
                pltpu.VMEM((tq, 1), jnp.float32),      # running max m
                pltpu.VMEM((tq, 1), jnp.float32),      # running denom l
                pltpu.VMEM((tq, d_pad), jnp.float32),  # running numerator acc
            ],
        ),
        compiler_params=pltpu.CompilerParams(
            # Two parallel axes so both v7x TensorCores get work even at small b.
            dimension_semantics=("parallel", "parallel", "arbitrary"),
            vmem_limit_bytes=_VMEM_LIMIT,
        ),
        cost_estimate=attn_cost,
    )(q, k, v)

    return out[:, :, :d_out]


# ---------------------------------------------------------------------------
# Pure-JAX reference (eval-mode PyTorch forward, f32)
# ---------------------------------------------------------------------------
def _reference(x, w_query, w_key, w_value):
    q = x @ w_query.T
    k = x @ w_key.T
    v = x @ w_value.T
    d_k = k.shape[-1]
    scores = jnp.einsum("btd,bsd->bts", q, k)
    T = x.shape[1]
    mask = jnp.triu(jnp.ones((T, T), dtype=bool), k=1)
    scores = jnp.where(mask[None, :, :], -jnp.inf, scores)
    weights = jax.nn.softmax(scores / jnp.sqrt(jnp.float32(d_k)), axis=-1)
    return weights @ v


if __name__ == "__main__":
    key = jax.random.PRNGKey(0)
    b, T, d_in, d_out = 2, 8, 32, 32
    dropout = 0.0

    kx, kq, kk, kv = jax.random.split(key, 4)
    x = jax.random.normal(kx, (b, T, d_in), dtype=jnp.float32)
    # nn.Linear(d_in, d_out, bias=False) weight shape: (d_out, d_in)
    w_query = jax.random.normal(kq, (d_out, d_in), dtype=jnp.float32) * 0.1
    w_key = jax.random.normal(kk, (d_out, d_in), dtype=jnp.float32) * 0.1
    w_value = jax.random.normal(kv, (d_out, d_in), dtype=jnp.float32) * 0.1

    out = causal_attention(x, w_query, w_key, w_value, dropout)
    out = jax.block_until_ready(out)

    ref = _reference(x, w_query, w_key, w_value)
    assert out.shape == (b, T, d_out)
    # bf16 matmul operands (f32 accumulation) + approximate EUP reciprocal vs f32 reference.
    assert jnp.allclose(out, ref, atol=5e-2, rtol=5e-2), "mismatch vs reference"

    print("KERNEL_OK")
</pallas_src>

<mosaic_0001>
module attributes {stable_mosaic.version = 11 : i64} {
  func.func @_qkv_proj_kernel(%arg0: i32, %arg1: i32, %arg2: memref<16x32xbf16, #tpu.memory_space<vmem>>, %arg3: memref<32x384xbf16, #tpu.memory_space<vmem>>, %arg4: memref<16x128xbf16, #tpu.memory_space<vmem>>, %arg5: memref<16x128xbf16, #tpu.memory_space<vmem>>, %arg6: memref<16x128xbf16, #tpu.memory_space<vmem>>, %arg7: memref<16x384xf32, #tpu.memory_space<vmem>>) attributes {dimension_semantics = [#tpu.dimension_semantics<parallel>, #tpu.dimension_semantics<arbitrary>], iteration_bounds = array<i64: 1, 1>, scalar_prefetch = 0 : i64, scratch_operands = 1 : i64, tpu.core_type = #tpu.core_type<tc>, window_params = [{transform_indices = @transform_0, window_bounds = array<i64: 16, 32>}, {transform_indices = @transform_1, window_bounds = array<i64: 32, 384>}, {transform_indices = @transform_2, window_bounds = array<i64: 16, 128>}, {transform_indices = @transform_3, window_bounds = array<i64: 16, 128>}, {transform_indices = @transform_4, window_bounds = array<i64: 16, 128>}]} {
    %c0_i32 = arith.constant 0 : i32
    %0 = arith.cmpi eq, %arg1, %c0_i32 : i32
    %1 = arith.extui %0 : i1 to i32
    %c0_i32_0 = arith.constant 0 : i32
    %2 = arith.cmpi ne, %1, %c0_i32_0 : i32
    scf.if %2 {
      %cst_10 = arith.constant 0.000000e+00 : f32
      %12 = vector.broadcast %cst_10 : f32 to vector<16x384xf32>
      %c0_11 = arith.constant 0 : index
      %c0_12 = arith.constant 0 : index
      %13 = vector.load %arg7[%c0_11, %c0_12] : memref<16x384xf32, #tpu.memory_space<vmem>>, vector<16x384xf32>
      tpu.vector_store %arg7[%c0_11, %c0_12], %12 {strides = array<i32>} : memref<16x384xf32, #tpu.memory_space<vmem>>, vector<16x384xf32>,
    } else {
    }
    %c0 = arith.constant 0 : index
    %c0_1 = arith.constant 0 : index
    %3 = vector.load %arg7[%c0, %c0_1] : memref<16x384xf32, #tpu.memory_space<vmem>>, vector<16x384xf32>
    %c0_2 = arith.constant 0 : index
    %c0_3 = arith.constant 0 : index
    %4 = vector.load %arg2[%c0_2, %c0_3] : memref<16x32xbf16, #tpu.memory_space<vmem>>, vector<16x32xbf16>
    %c0_4 = arith.constant 0 : index
    %c0_5 = arith.constant 0 : index
    %5 = vector.load %arg3[%c0_4, %c0_5] : memref<32x384xbf16, #tpu.memory_space<vmem>>, vector<32x384xbf16>
    %cst = arith.constant dense<0.000000e+00> : vector<16x384xf32>
    %6 = tpu.matmul %4, %5, %cst {dimension_numbers = #tpu.dot_dimension_numbers<[1], [0], [0], [1], [0, 0, 1, 1], [], []>} : vector<16x32xbf16>, vector<32x384xbf16>, vector<16x384xf32> -> vector<16x384xf32>
    %7 = arith.addf %3, %6 : vector<16x384xf32>
    %c0_6 = arith.constant 0 : index
    %c0_7 = arith.constant 0 : index
    %8 = vector.load %arg7[%c0_6, %c0_7] : memref<16x384xf32, #tpu.memory_space<vmem>>, vector<16x384xf32>
    tpu.vector_store %arg7[%c0_6, %c0_7], %7 {strides = array<i32>} : memref<16x384xf32, #tpu.memory_space<vmem>>, vector<16x384xf32>,
    %c0_i32_8 = arith.constant 0 : i32
    %9 = arith.cmpi eq, %arg1, %c0_i32_8 : i32
    %10 = arith.extui %9 : i1 to i32
    %c0_i32_9 = arith.constant 0 : i32
    %11 = arith.cmpi ne, %10, %c0_i32_9 : i32
    scf.if %11 {
      %c0_10 = arith.constant 0 : index
      %c0_11 = arith.constant 0 : index
      %12 = vector.load %arg7[%c0_10, %c0_11] : memref<16x384xf32, #tpu.memory_space<vmem>>, vector<16x384xf32>
      %13 = vector.extract_strided_slice %12 {offsets = [0, 0], sizes = [16, 128], strides = [1, 1]} : vector<16x384xf32> to vector<16x128xf32>
      %14 = arith.truncf %13 : vector<16x128xf32> to vector<16x128xbf16>
      %c0_12 = arith.constant 0 : index
      %c0_13 = arith.constant 0 : index
      %15 = vector.load %arg4[%c0_12, %c0_13] : memref<16x128xbf16, #tpu.memory_space<vmem>>, vector<16x128xbf16>
      tpu.vector_store %arg4[%c0_12, %c0_13], %14 {strides = array<i32>} : memref<16x128xbf16, #tpu.memory_space<vmem>>, vector<16x128xbf16>,
      %16 = vector.extract_strided_slice %12 {offsets = [0, 128], sizes = [16, 128], strides = [1, 1]} : vector<16x384xf32> to vector<16x128xf32>
      %17 = arith.truncf %16 : vector<16x128xf32> to vector<16x128xbf16>
      %c0_14 = arith.constant 0 : index
      %c0_15 = arith.constant 0 : index
      %18 = vector.load %arg5[%c0_14, %c0_15] : memref<16x128xbf16, #tpu.memory_space<vmem>>, vector<16x128xbf16>
      tpu.vector_store %arg5[%c0_14, %c0_15], %17 {strides = array<i32>} : memref<16x128xbf16, #tpu.memory_space<vmem>>, vector<16x128xbf16>,
      %19 = vector.extract_strided_slice %12 {offsets = [0, 256], sizes = [16, 128], strides = [1, 1]} : vector<16x384xf32> to vector<16x128xf32>
      %20 = arith.truncf %19 : vector<16x128xf32> to vector<16x128xbf16>
      %c0_16 = arith.constant 0 : index
      %c0_17 = arith.constant 0 : index
      %21 = vector.load %arg6[%c0_16, %c0_17] : memref<16x128xbf16, #tpu.memory_space<vmem>>, vector<16x128xbf16>
      tpu.vector_store %arg6[%c0_16, %c0_17], %20 {strides = array<i32>} : memref<16x128xbf16, #tpu.memory_space<vmem>>, vector<16x128xbf16>,
    } else {
    }
    return
  }
  func.func @transform_0(%arg0: i32, %arg1: i32) -> (i32, i32) {
    %c0_i32 = arith.constant 0 : i32
    return %arg0, %arg1 : i32, i32
  }
  func.func @transform_1(%arg0: i32, %arg1: i32) -> (i32, i32) {
    %c0_i32 = arith.constant 0 : i32
    %c0_i32_0 = arith.constant 0 : i32
    return %arg1, %c0_i32 : i32, i32
  }
  func.func @transform_2(%arg0: i32, %arg1: i32) -> (i32, i32) {
    %c0_i32 = arith.constant 0 : i32
    %c0_i32_0 = arith.constant 0 : i32
    return %arg0, %c0_i32 : i32, i32
  }
  func.func @transform_3(%arg0: i32, %arg1: i32) -> (i32, i32) {
    %c0_i32 = arith.constant 0 : i32
    %c0_i32_0 = arith.constant 0 : i32
    return %arg0, %c0_i32 : i32, i32
  }
  func.func @transform_4(%arg0: i32, %arg1: i32) -> (i32, i32) {
    %c0_i32 = arith.constant 0 : i32
    %c0_i32_0 = arith.constant 0 : i32
    return %arg0, %c0_i32 : i32, i32
  }
}

</mosaic_0001>

<llo_original>
// kernel: tpu_custom_call.1
$region0: #{tpu_custom_call.1}
  #allocation0 [shape = 'u32[]', space=smem, size = 0x4, offset = 0x4, fixed_abs, tag = 'smem constant byte address 0x4 - core index']
  #allocation1 [shape = 'u32[144,128]{1,0:T(1,128)}', space=vmem, size = 0x12000, scoped, tag = 'internal scratch']
  #allocation2 [shape = 'f32[16,384]{1,0:T(8,128)}', space=vmem, size = 0x6000, scoped, tag = 'scratch operand']
  %s0 = inlined_call_operand.hbm [shape: bf16[16,32], index: 0, kind: input, shape index: {}]
  %s1 = inlined_call_operand.hbm [shape: bf16[32,384], index: 1, kind: input, shape index: {}]
  %s2 = inlined_call_operand.hbm [shape: bf16[16,128], index: 2, kind: output, shape index: {0}]
  %s3 = inlined_call_operand.hbm [shape: bf16[16,128], index: 3, kind: output, shape index: {1}]
  %s4 = inlined_call_operand.hbm [shape: bf16[16,128], index: 4, kind: output, shape index: {2}]
  %5 = xla_tuple %s2, %s3, %s4
  %s6 = sld [smem:[#allocation0]]
  $region50: #{tpu_custom_call.1} parent=0
    _
  %s8 = ssub.s32 1, %s6
  %s9 = scalar_select 0, %s8, %s6
  $region1: #{tpu_custom_call.1} parent=0
    #allocation3 [shape = 'u8[4096]{0}', space=vmem, size = 0x1000, scoped, tag = 'input window, operand 0, single buffered']
    #allocation4 [shape = 's32[1]{0}', space=sflag, size = 0x4, scoped, tag = 'scoped memory for tpu_custom_call.1']
    #allocation5 [shape = 's32[1]{0}', space=sflag, size = 0x4, scoped, tag = 'scoped memory for tpu_custom_call.1']
    #allocation6 [shape = 'u8[24576]{0}', space=vmem, size = 0x6000, scoped, tag = 'input window, operand 1, single buffered']
    #allocation7 [shape = 's32[1]{0}', space=sflag, size = 0x4, scoped, tag = 'scoped memory for tpu_custom_call.1']
    #allocation8 [shape = 'u8[4096]{0}', space=vmem, size = 0x1000, scoped, tag = 'output window, operand 0, single buffered']
    #allocation9 [shape = 'u8[4096]{0}', space=vmem, size = 0x1000, scoped, tag = 'output window, operand 1, single buffered']
    #allocation10 [shape = 's32[1]{0}', space=sflag, size = 0x4, scoped, tag = 'scoped memory for tpu_custom_call.1']
    #allocation11 [shape = 'u8[4096]{0}', space=vmem, size = 0x1000, scoped, tag = 'output window, operand 2, single buffered']
    %10 = vsyncpa [#allocation4], 0
    %11 = vsyncpa [#allocation7], 0
    %12 = vsyncpa [#allocation5], 0
    %13 = vsyncpa [#allocation10], 0
    // Predicated region
    $region2: #{tpu_custom_call.1} parent=1 // pred_check
      _
    $region3: #{tpu_custom_call.1} parent=1 // pred_check_branch
      %15 = sbr.rel (0) target = $region5
    $region4: #{tpu_custom_call.1} parent=1 // pred_region
      %s17 = ssub.s32 128, 128
      %18 = vsyncadd [#allocation4], %s17
      %s19 = sshll.u32 [#allocation3], 4
      %s20 = int_to_ptr.vmem [resolvable:$true] %s19
      %25 = dma.hbm_to_vmem [thread:$0]  %s0, 128, %s20, [#allocation4], 64, 64, 4
    $region5: #{tpu_custom_call.1} parent=1 // pred_fallthru
      _
    // Predicated region
    $region6: #{tpu_custom_call.1} parent=1 // pred_check
      _
    $region7: #{tpu_custom_call.1} parent=1 // pred_check_branch
      %27 = sbr.rel (0) target = $region9
    $region8: #{tpu_custom_call.1} parent=1 // pred_region
      %s29 = ssub.s32 768, 768
      %30 = vsyncadd [#allocation7], %s29
      %s31 = sshll.u32 [#allocation6], 4
      %s32 = int_to_ptr.vmem [resolvable:$true] %s31
      %37 = dma.hbm_to_vmem [thread:$0]  %s1, 768, %s32, [#allocation7], 192, 192, 12
    $region9: #{tpu_custom_call.1} parent=1 // pred_fallthru
      _
    // Predicated region
    $region10: #{tpu_custom_call.1} parent=1 // pred_check
      _
    $region11: #{tpu_custom_call.1} parent=1 // pred_check_branch
      %39 = sbr.rel (0) target = $region13
    $region12: #{tpu_custom_call.1} parent=1 // pred_region
      %40 = dma.done [#allocation4], 128
    $region13: #{tpu_custom_call.1} parent=1 // pred_fallthru
      _
    // Predicated region
    $region14: #{tpu_custom_call.1} parent=1 // pred_check
      _
    $region15: #{tpu_custom_call.1} parent=1 // pred_check_branch
      %42 = sbr.rel (0) target = $region17
    $region16: #{tpu_custom_call.1} parent=1 // pred_region
      %43 = dma.done [#allocation7], 768
    $region17: #{tpu_custom_call.1} parent=1 // pred_fallthru
      _
    %p45 = scmp.eq.s32.totalorder 0, 0
    // Predicated region
    $region18: #{tpu_custom_call.1} parent=1 // pred_check
      %p46 = pneg %p45
    $region19: #{tpu_custom_call.1} parent=1 // pred_check_branch
      %48 = sbr.rel (%p46) target = $region21
    $region20: #{tpu_custom_call.1} parent=1 // pred_region
      %49 = vst [vmem:[#allocation2] sm:$0xff] 0.0
      %50 = vst [vmem:[#allocation2 + $0x8] sm:$0xff] 0.0
      %51 = vst [vmem:[#allocation2 + $0x10] sm:$0xff] 0.0
      %52 = vst [vmem:[#allocation2 + $0x18] sm:$0xff] 0.0
      %53 = vst [vmem:[#allocation2 + $0x20] sm:$0xff] 0.0
      %54 = vst [vmem:[#allocation2 + $0x28] sm:$0xff] 0.0
    $region21: #{tpu_custom_call.1} parent=1 // pred_fallthru
      _
    %v55 = vld [vmem:[#allocation2] sm:$0xff]
    %v56 = vld [vmem:[#allocation2 + $0x8] sm:$0xff]
    %v57 = vld [vmem:[#allocation2 + $0x10] sm:$0xff]
    %v58 = vld [vmem:[#allocation2 + $0x18] sm:$0xff]
    %v59 = vld [vmem:[#allocation2 + $0x20] sm:$0xff]
    %v60 = vld [vmem:[#allocation2 + $0x28] sm:$0xff]
    %v61 = vld [vmem:[#allocation3] sm:$0xf]
    %v62 = vld [vmem:[#allocation3 + $0x4] sm:$0xf]
    %v63 = vld [vmem:[#allocation6] sm:$0xff]
    %v64 = vld [vmem:[#allocation6 + $0x8] sm:$0xf]
    %v65 = vld [vmem:[#allocation6 + $0xc] sm:$0xff]
    %v66 = vld [vmem:[#allocation6 + $0x14] sm:$0xf]
    %v67 = vld [vmem:[#allocation6 + $0x18] sm:$0xff]
    %v68 = vld [vmem:[#allocation6 + $0x20] sm:$0xf]
    %v69 = vld [vmem:[#allocation6 + $0x24] sm:$0xff]
    %v70 = vld [vmem:[#allocation6 + $0x2c] sm:$0xf]
    %v73 = vunpack.c.l.b16 %v61
    %v74 = vunpack.c.l.b16 %v62
    %v75 = vpack.c.b16 %v74, %v73
    %v84 = vunpack.c.l.b16 %v63
    %v85 = vunpack.c.h.b16 %v63
    %v86 = vunpack.c.l.b16 %v64
    %v87 = vunpack.c.l.b16 %v65
    %v88 = vunpack.c.h.b16 %v65
    %v89 = vunpack.c.l.b16 %v66
    %v90 = vunpack.c.l.b16 %v67
    %v91 = vunpack.c.h.b16 %v67
    %v92 = vunpack.c.l.b16 %v68
    %v93 = vunpack.c.l.b16 %v69
    %v94 = vunpack.c.h.b16 %v69
    %v95 = vunpack.c.l.b16 %v70
    %v96 = vpack.c.b16 %v87, %v84
    %v97 = vpack.c.b16 %v88, %v85
    %v98 = vpack.c.b16 %v89, %v86
    %v99 = vpack.c.b16 %v93, %v90
    %v100 = vpack.c.b16 %v94, %v91
    %v101 = vpack.c.b16 %v95, %v92
    %vm108 = vcmask 261120
    %v110 = vsel %vm108, %v75, 0
    %112 = vmatprep.subr.bf16.mxu0 %v97
    %113 = vmatpush1.bf16.msra.mxu0 %v96
    %114 = vmatprep.subr.bf16.mxu0 %v100
    %115 = vmatpush1.bf16.msra.mxu0 %v99
    %116 = vmatprep.subr.bf16.mxu0 0
    %117 = vmatpush1.bf16.msra.mxu0 0
    %118 = vmatprep.subr.bf16.mxu0 0
    %119 = vmatpush1.bf16.msra.mxu0 0
    %120 = vmatprep.subr.bf16.mxu0 0
    %121 = vmatpush1.bf16.msra.mxu0 0
    %122 = vmatprep.subr.bf16.mxu0 0
    %123 = vmatpush1.bf16.msra.mxu0 0
    %124 = vmatprep.subr.bf16.mxu0 0
    %125 = vmatpush1.bf16.msra.mxu0 0
    %126 = vmatprep.subr.bf16.mxu0 0
    %127 = vmatpush1.bf16.msra.mxu0 0
    %128 = vmatprep.subr.bf16.mxu0 0
    %129 = vmatpush1.bf16.msra.mxu0 0
    %130 = vmatprep.subr.bf16.mxu0 0
    %131 = vmatpush1.bf16.msra.mxu0 0
    %132 = vmatprep.subr.bf16.mxu0 0
    %133 = vmatpush1.bf16.msra.mxu0 0
    %134 = vmatprep.subr.bf16.mxu0 0
    %135 = vmatpush1.bf16.msra.mxu0 0
    %136 = vmatprep.subr.bf16.mxu0 0
    %137 = vmatpush1.bf16.msra.mxu0 0
    %138 = vmatprep.subr.bf16.mxu0 0
    %139 = vmatpush1.bf16.msra.mxu0 0
    %140 = vmatprep.subr.bf16.mxu0 0
    %141 = vmatpush1.bf16.msra.mxu0 0
    %142 = vmatprep.subr.bf16.mxu0 0
    %143 = vmatpush1.bf16.msra.mxu0 0
    %144 = vmatprep.mubr.bf16.mxu0 0
    %145 = vmatmul.mubr.bf16.gmra.mrb[0].mxu0 %v110
    %v146 = vpop.f32.mrb[0].mxu0
    %v147 = vadd.f32 0.0, %v146
    %v148 = vpop.f32.mrb[0].mxu0
    %v149 = vadd.f32 0.0, %v148
    %v150 = vpop.f32.mrb[0].mxu0
    %v151 = vadd.f32 0.0, %v150
    %v152 = vpop.f32.mrb[0].mxu0
    %v153 = vadd.f32 0.0, %v152
    %154 = vdwg.mxu0
    %155 = vmatprep.subr.bf16.mxu0 0
    %156 = vmatpush1.bf16.msra.mxu0 %v98
    %157 = vmatprep.subr.bf16.mxu0 0
    %158 = vmatpush1.bf16.msra.mxu0 %v101
    %159 = vmatprep.subr.bf16.mxu0 0
    %160 = vmatpush1.bf16.msra.mxu0 0
    %161 = vmatprep.subr.bf16.mxu0 0
    %162 = vmatpush1.bf16.msra.mxu0 0
    %163 = vmatprep.subr.bf16.mxu0 0
    %164 = vmatpush1.bf16.msra.mxu0 0
    %165 = vmatprep.subr.bf16.mxu0 0
    %166 = vmatpush1.bf16.msra.mxu0 0
    %167 = vmatprep.subr.bf16.mxu0 0
    %168 = vmatpush1.bf16.msra.mxu0 0
    %169 = vmatprep.subr.bf16.mxu0 0
    %170 = vmatpush1.bf16.msra.mxu0 0
    %171 = vmatprep.subr.bf16.mxu0 0
    %172 = vmatpush1.bf16.msra.mxu0 0
    %173 = vmatprep.subr.bf16.mxu0 0
    %174 = vmatpush1.bf16.msra.mxu0 0
    %175 = vmatprep.subr.bf16.mxu0 0
    %176 = vmatpush1.bf16.msra.mxu0 0
    %177 = vmatprep.subr.bf16.mxu0 0
    %178 = vmatpush1.bf16.msra.mxu0 0
    %179 = vmatprep.subr.bf16.mxu0 0
    %180 = vmatpush1.bf16.msra.mxu0 0
    %181 = vmatprep.subr.bf16.mxu0 0
    %182 = vmatpush1.bf16.msra.mxu0 0
    %183 = vmatprep.subr.bf16.mxu0 0
    %184 = vmatpush1.bf16.msra.mxu0 0
    %185 = vmatprep.subr.bf16.mxu0 0
    %186 = vmatpush1.bf16.msra.mxu0 0
    %187 = vmatprep.mubr.bf16.mxu0 0
    %188 = vmatmul.mubr.bf16.gmra.mrb[0].mxu0 %v110
    %v189 = vpop.f32.mrb[0].mxu0
    %v190 = vadd.f32 0.0, %v189
    %v191 = vpop.f32.mrb[0].mxu0
    %v192 = vpop.f32.mrb[0].mxu0
    %v193 = vadd.f32 0.0, %v192
    %v194 = vpop.f32.mrb[0].mxu0
    %195 = vdwg.mxu0
    %v196 = vadd.f32 %v55, %v147
    %v197 = vadd.f32 %v56, %v149
    %v198 = vadd.f32 %v57, %v190
    %v199 = vadd.f32 %v58, %v151
    %v200 = vadd.f32 %v59, %v153
    %v201 = vadd.f32 %v60, %v193
    %202 = vst [vmem:[#allocation2] sm:$0xff] %v196
    %203 = vst [vmem:[#allocation2 + $0x8] sm:$0xff] %v197
    %204 = vst [vmem:[#allocation2 + $0x10] sm:$0xff] %v198
    %205 = vst [vmem:[#allocation2 + $0x18] sm:$0xff] %v199
    %206 = vst [vmem:[#allocation2 + $0x20] sm:$0xff] %v200
    %207 = vst [vmem:[#allocation2 + $0x28] sm:$0xff] %v201
    // Predicated region
    $region22: #{tpu_custom_call.1} parent=1 // pred_check
      %p208 = pneg %p45
    $region23: #{tpu_custom_call.1} parent=1 // pred_check_branch
      %210 = sbr.rel (%p208) target = $region25
    $region24: #{tpu_custom_call.1} parent=1 // pred_region
      %v211 = vld [vmem:[#allocation2] sm:$0xff]
      %v212 = vld [vmem:[#allocation2 + $0x8] sm:$0xff]
      %v213 = vld [vmem:[#allocation2 + $0x10] sm:$0xff]
      %v214 = vld [vmem:[#allocation2 + $0x18] sm:$0xff]
      %v215 = vld [vmem:[#allocation2 + $0x20] sm:$0xff]
      %v216 = vld [vmem:[#allocation2 + $0x28] sm:$0xff]
      %v217 = vpack.c.bf16 %v214, %v211
      %v219 = vunpack.c.l.b16 %v217
      %v220 = vunpack.c.h.b16 %v217
      %v221 = vpack.c.b16 %v219, %v219
      %v222 = vpack.c.b16 %v220, %v220
      %225 = vst [vmem:[#allocation8] sm:$0xf] %v221
      %226 = vst [vmem:[#allocation8 + $0x4] sm:$0xf] %v222
      %v227 = vpack.c.bf16 %v215, %v212
      %v229 = vunpack.c.l.b16 %v227
      %v230 = vunpack.c.h.b16 %v227
      %v231 = vpack.c.b16 %v229, %v229
      %v232 = vpack.c.b16 %v230, %v230
      %235 = vst [vmem:[#allocation9] sm:$0xf] %v231
      %236 = vst [vmem:[#allocation9 + $0x4] sm:$0xf] %v232
      %v237 = vpack.c.bf16 %v216, %v213
      %v239 = vunpack.c.l.b16 %v237
      %v240 = vunpack.c.h.b16 %v237
      %v241 = vpack.c.b16 %v239, %v239
      %v242 = vpack.c.b16 %v240, %v240
      %245 = vst [vmem:[#allocation11] sm:$0xf] %v241
      %246 = vst [vmem:[#allocation11 + $0x4] sm:$0xf] %v242
    $region25: #{tpu_custom_call.1} parent=1 // pred_fallthru
      _
    // Predicated region
    $region26: #{tpu_custom_call.1} parent=1 // pred_check
      _
    $region27: #{tpu_custom_call.1} parent=1 // pred_check_branch
      %248 = sbr.rel (0) target = $region29
    $region28: #{tpu_custom_call.1} parent=1 // pred_region
      %s250 = ssub.s32 128, 128
      %251 = vsyncadd [#allocation5], %s250
      %s252 = sshll.u32 [#allocation8], 4
      %s253 = int_to_ptr.vmem [resolvable:$true] %s252
      %258 = dma.vmem_to_hbm [thread:$0]  %s253, 128, %s2, [#allocation5], 64, 64, 4
    $region29: #{tpu_custom_call.1} parent=1 // pred_fallthru
      _
    // Predicated region
    $region30: #{tpu_custom_call.1} parent=1 // pred_check
      _
    $region31: #{tpu_custom_call.1} parent=1 // pred_check_branch
      %260 = sbr.rel (0) target = $region33
    $region32: #{tpu_custom_call.1} parent=1 // pred_region
      %s262 = ssub.s32 128, 128
      %263 = vsyncadd [#allocation10], %s262
      %s264 = sshll.u32 [#allocation9], 4
      %s265 = int_to_ptr.vmem [resolvable:$true] %s264
      %270 = dma.vmem_to_hbm [thread:$0]  %s265, 128, %s3, [#allocation10], 64, 64, 4
    $region33: #{tpu_custom_call.1} parent=1 // pred_fallthru
      _
    // Predicated region
    $region34: #{tpu_custom_call.1} parent=1 // pred_check
      _
    $region35: #{tpu_custom_call.1} parent=1 // pred_check_branch
      %272 = sbr.rel (0) target = $region37
    $region36: #{tpu_custom_call.1} parent=1 // pred_region
      %s274 = ssub.s32 128, 128
      %275 = vsyncadd [#allocation10], %s274
      %s276 = sshll.u32 [#allocation11], 4
      %s277 = int_to_ptr.vmem [resolvable:$true] %s276
      %282 = dma.vmem_to_hbm [thread:$0]  %s277, 128, %s4, [#allocation10], 64, 64, 4
    $region37: #{tpu_custom_call.1} parent=1 // pred_fallthru
      _
    // Predicated region
    $region38: #{tpu_custom_call.1} parent=1 // pred_check
      _
    $region39: #{tpu_custom_call.1} parent=1 // pred_check_branch
      %284 = sbr.rel (0) target = $region41
    $region40: #{tpu_custom_call.1} parent=1 // pred_region
      %285 = dma.done [#allocation5], 128
    $region41: #{tpu_custom_call.1} parent=1 // pred_fallthru
      _
    // Predicated region
    $region42: #{tpu_custom_call.1} parent=1 // pred_check
      _
    $region43: #{tpu_custom_call.1} parent=1 // pred_check_branch
      %287 = sbr.rel (0) target = $region45
    $region44: #{tpu_custom_call.1} parent=1 // pred_region
      %288 = dma.done [#allocation10], 128
    $region45: #{tpu_custom_call.1} parent=1 // pred_fallthru
      _
    // Predicated region
    $region46: #{tpu_custom_call.1} parent=1 // pred_check
      _
    $region47: #{tpu_custom_call.1} parent=1 // pred_check_branch
      %290 = sbr.rel (0) target = $region49
    $region48: #{tpu_custom_call.1} parent=1 // pred_region
      %291 = dma.done [#allocation10], 128
    $region49: #{tpu_custom_call.1} parent=1 // pred_fallthru
      _
    %292 = vsyncpa [#allocation4], 1
    %293 = vsyncpa [#allocation7], 1
    %294 = vsyncpa [#allocation5], 1
    %295 = vsyncpa [#allocation10], 1

</llo_original>
